<compile_context>
chip_gen: v6e
topology: v6e:2x2x1
jax: 0.10.0
libtpu: 0.0.40
codegen_flags: <defaults>
</compile_context>

<pallas_src>
import jax
import jax.numpy as jnp
from jax.experimental import pallas as pl
from jax.experimental.pallas import tpu as pltpu


def tlu_kernel(tau_ref, x_ref, o_ref):
    # tau_ref: (rb, 1) or (1, lb) tile (same dtype as x) — VPU broadcast either way.
    # x_ref  : (rb, lb) lane-dense tile.
    o_ref[...] = jnp.maximum(x_ref[...], tau_ref[...])


def _pick_blocks(R, L, dtype):
    """Pick (row_block, lane_block) for a (R, L) slab.

    Blocks obey the (8*packing, 128) tiling rule (or use the full dim, which is
    always legal) and target ~4 MiB per tile; the caller uses a cdiv grid so
    non-divisible shapes simply get a padded/masked edge block.
    """
    itemsize = jnp.dtype(dtype).itemsize
    packing = max(1, 4 // itemsize)      # sublane packing: 1 f32, 2 bf16, 4 int8
    sub = 8 * packing                    # dtype-aware minimal dense row multiple
    budget = 4 * 1024 * 1024             # ~4 MiB tile; double-buffered in+out fits
                                         # comfortably under the 32 MiB limit we set

    # Row block: up to 512 rows, rounded to a sublane-packing multiple.
    if R <= sub:
        rb = R                           # full dim — always legal
    else:
        rb = min(R, 512)
        rb = max(sub, (rb // sub) * sub)

    # Lane block: spend the rest of the budget on lanes (multiple of 128).
    max_lanes = max(128, budget // (rb * itemsize))
    if L <= max_lanes:
        lb = L                           # full dim — always legal, no edge masking
    else:
        lb = (max_lanes // 128) * 128

    # v7x has 2 TensorCores that shard parallel grid axes: avoid a degenerate
    # (1, 1) grid when the row axis can be split cleanly.
    if (R + rb - 1) // rb == 1 and (L + lb - 1) // lb == 1 and R > sub:
        half = (R + 1) // 2
        rb = max(sub, ((half + sub - 1) // sub) * sub)

    return rb, lb


def tlu(x: jax.Array, tau: jax.Array) -> jax.Array:
    """x: (N, C, H, W); tau: (1, C, 1, 1) (PyTorch parameter shape)."""
    N, C, H, W = x.shape
    HW = H * W

    if HW % 128 == 0 or HW >= 512:
        # Lane-dense spatial extent: rows are (n, c) pairs, lanes are H*W.
        R, L = N * C, HW
        x2 = x.reshape(R, L)
        tau2 = jnp.tile(tau.reshape(C), N).reshape(R, 1).astype(x.dtype)
        tau_is_row = False
    else:
        # Small / misaligned H*W: collapse channels into the lane axis instead,
        # so stores stay lane-dense; tau becomes a per-lane row vector.
        R, L = N, C * HW
        x2 = x.reshape(R, L)
        tau2 = jnp.repeat(tau.reshape(C), HW).reshape(1, L).astype(x.dtype)
        tau_is_row = True

    rb, lb = _pick_blocks(R, L, x.dtype)
    grid = (pl.cdiv(R, rb), pl.cdiv(L, lb))

    if tau_is_row:
        tau_spec = pl.BlockSpec((1, lb), lambda i, j: (0, j))
    else:
        # Constant across j (inner axis) -> tau tile DMA is reused across lane tiles.
        tau_spec = pl.BlockSpec((rb, 1), lambda i, j: (i, 0))

    itemsize = jnp.dtype(x.dtype).itemsize
    cost = pl.CostEstimate(
        flops=R * L,
        transcendentals=0,
        bytes_accessed=2 * R * L * itemsize + tau2.size * itemsize,
    )

    out2 = pl.pallas_call(
        tlu_kernel,
        out_shape=jax.ShapeDtypeStruct((R, L), x.dtype),
        grid=grid,
        in_specs=[
            tau_spec,                                    # tau tile (VMEM)
            pl.BlockSpec((rb, lb), lambda i, j: (i, j)),  # x tile
        ],
        out_specs=pl.BlockSpec((rb, lb), lambda i, j: (i, j)),
        compiler_params=pltpu.CompilerParams(
            dimension_semantics=("parallel", "parallel"),
            vmem_limit_bytes=32 * 1024 * 1024,
        ),
        cost_estimate=cost,
    )(tau2, x2)

    return out2.reshape(N, C, H, W)


if __name__ == "__main__":
    key = jax.random.PRNGKey(0)
    N, C, H, W = 2, 4, 16, 16

    x = jax.random.normal(key, (N, C, H, W), dtype=jnp.float32)
    # Parameter init matches nn.init.zeros_(self.tau)
    tau = jnp.zeros((1, C, 1, 1), dtype=jnp.float32)

    out = jax.block_until_ready(tlu(x, tau))
    ref = jnp.maximum(x, tau)
    assert out.shape == ref.shape and out.dtype == ref.dtype
    assert jnp.allclose(out, ref), "mismatch vs reference (zero tau)"

    # Non-trivial tau to exercise the per-channel broadcast (lane-dense path).
    tau2 = jax.random.normal(jax.random.PRNGKey(1), (1, C, 1, 1), dtype=jnp.float32)
    out2 = jax.block_until_ready(tlu(x, tau2))
    assert jnp.allclose(out2, jnp.maximum(x, tau2)), "mismatch vs reference (tau2)"

    # Small, lane-misaligned spatial extent (H*W = 49) to exercise the
    # (N, C*H*W) layout + per-lane tau path.
    x_small = jax.random.normal(jax.random.PRNGKey(2), (N, C, 7, 7), dtype=jnp.float32)
    out3 = jax.block_until_ready(tlu(x_small, tau2))
    assert jnp.allclose(out3, jnp.maximum(x_small, tau2)), "mismatch vs reference (7x7)"

    # bf16 input to exercise dtype-aware block picking.
    # TODO(synk): PyTorch would promote bf16 x to f32 for max against an f32
    # parameter; here tau is pre-cast to x.dtype (bf16) instead.
    x_bf16 = x.astype(jnp.bfloat16)
    out4 = jax.block_until_ready(tlu(x_bf16, tau2))
    assert jnp.allclose(out4, jnp.maximum(x_bf16, tau2.astype(jnp.bfloat16))), \
        "mismatch vs reference (bf16)"

    print("KERNEL_OK")
</pallas_src>

<mosaic_0001>
module attributes {stable_mosaic.version = 11 : i64} {
  func.func @tlu_kernel(%arg0: i32, %arg1: i32, %arg2: memref<8x1xf32, #tpu.memory_space<vmem>>, %arg3: memref<8x256xf32, #tpu.memory_space<vmem>>, %arg4: memref<8x256xf32, #tpu.memory_space<vmem>>) attributes {dimension_semantics = [#tpu.dimension_semantics<parallel>, #tpu.dimension_semantics<parallel>], iteration_bounds = array<i64: 1, 1>, scalar_prefetch = 0 : i64, scratch_operands = 0 : i64, tpu.core_type = #tpu.core_type<tc>, window_params = [{transform_indices = @transform_0, window_bounds = array<i64: 8, 1>}, {transform_indices = @transform_1, window_bounds = array<i64: 8, 256>}, {transform_indices = @transform_2, window_bounds = array<i64: 8, 256>}]} {
    %c0 = arith.constant 0 : index
    %c0_0 = arith.constant 0 : index
    %0 = vector.load %arg3[%c0, %c0_0] : memref<8x256xf32, #tpu.memory_space<vmem>>, vector<8x256xf32>
    %c0_1 = arith.constant 0 : index
    %c0_2 = arith.constant 0 : index
    %1 = vector.load %arg2[%c0_1, %c0_2] : memref<8x1xf32, #tpu.memory_space<vmem>>, vector<8x1xf32>
    %2 = vector.broadcast %1 : vector<8x1xf32> to vector<8x256xf32>
    %3 = arith.maximumf %0, %2 : vector<8x256xf32>
    %c0_3 = arith.constant 0 : index
    %c0_4 = arith.constant 0 : index
    %4 = vector.load %arg4[%c0_3, %c0_4] : memref<8x256xf32, #tpu.memory_space<vmem>>, vector<8x256xf32>
    tpu.vector_store %arg4[%c0_3, %c0_4], %3 {strides = array<i32>} : memref<8x256xf32, #tpu.memory_space<vmem>>, vector<8x256xf32>,
    return
  }
  func.func @transform_0(%arg0: i32, %arg1: i32) -> (i32, i32) {
    %c0_i32 = arith.constant 0 : i32
    %c0_i32_0 = arith.constant 0 : i32
    return %arg0, %c0_i32 : i32, i32
  }
  func.func @transform_1(%arg0: i32, %arg1: i32) -> (i32, i32) {
    %c0_i32 = arith.constant 0 : i32
    return %arg0, %arg1 : i32, i32
  }
  func.func @transform_2(%arg0: i32, %arg1: i32) -> (i32, i32) {
    %c0_i32 = arith.constant 0 : i32
    return %arg0, %arg1 : i32, i32
  }
}

</mosaic_0001>

<llo_original>
// kernel: tpu_custom_call.1
$region0: #{tpu_custom_call.1}
  #allocation0 [shape = 'u32[]', space=smem, size = 0x4, offset = 0x4, fixed_abs, tag = 'smem constant byte address 0x4 - core index']
  #allocation1 [shape = 'u32[144,128]{1,0:T(1,128)}', space=vmem, size = 0x12000, scoped, tag = 'internal scratch']
  %s0 = inlined_call_operand.vmem [shape: f32[8,1], index: 0, kind: input, shape index: {}]
  %s1 = inlined_call_operand.hbm [shape: f32[8,256], index: 1, kind: input, shape index: {}]
  %s2 = inlined_call_operand.hbm [shape: f32[8,256], index: 2, kind: output, shape index: {}]
  %s3 = sld [smem:[#allocation0]]
  $region22: #{tpu_custom_call.1} parent=0
    _
  %s5 = ssub.s32 1, %s3
  %s6 = scalar_select 0, %s5, %s3
  $region1: #{tpu_custom_call.1} parent=0
    #allocation2 [shape = 'u8[8192]{0}', space=vmem, size = 0x2000, scoped, tag = 'input window, operand 1, single buffered']
    #allocation3 [shape = 's32[1]{0}', space=sflag, size = 0x4, scoped, tag = 'scoped memory for tpu_custom_call.1']
    #allocation4 [shape = 's32[1]{0}', space=sflag, size = 0x4, scoped, tag = 'scoped memory for tpu_custom_call.1']
    #allocation5 [shape = 'u8[8192]{0}', space=vmem, size = 0x2000, scoped, tag = 'output window, operand 0, single buffered']
    %7 = vsyncpa [#allocation3], 0
    %8 = vsyncpa [#allocation4], 0
    // Predicated region
    $region2: #{tpu_custom_call.1} parent=1 // pred_check
      _
    $region3: #{tpu_custom_call.1} parent=1 // pred_check_branch
      %10 = sbr.rel (0) target = $region5
    $region4: #{tpu_custom_call.1} parent=1 // pred_region
      _
    $region5: #{tpu_custom_call.1} parent=1 // pred_fallthru
      _
    // Predicated region
    $region6: #{tpu_custom_call.1} parent=1 // pred_check
      _
    $region7: #{tpu_custom_call.1} parent=1 // pred_check_branch
      %12 = sbr.rel (0) target = $region9
    $region8: #{tpu_custom_call.1} parent=1 // pred_region
      %s14 = ssub.s32 256, 256
      %15 = vsyncadd [#allocation3], %s14
      %s17 = sshll.u32 [#allocation2], 4
      %s18 = int_to_ptr.vmem [resolvable:$true] %s17
      %20 = dma.hbm_to_vmem [thread:$0]  %s1, 256, %s18, [#allocation3]
    $region9: #{tpu_custom_call.1} parent=1 // pred_fallthru
      _
    // Predicated region
    $region10: #{tpu_custom_call.1} parent=1 // pred_check
      _
    $region11: #{tpu_custom_call.1} parent=1 // pred_check_branch
      %22 = sbr.rel (0) target = $region13
    $region12: #{tpu_custom_call.1} parent=1 // pred_region
      %23 = dma.done [#allocation3], 256
    $region13: #{tpu_custom_call.1} parent=1 // pred_fallthru
      _
    %v24 = vld [vmem:[#allocation2] sm:$0xff]
    %v25 = vld [vmem:[#allocation2 + $0x8] sm:$0xff]
    %v26 = vld [vmem:[%s0] sm:$0xff]
    %28 = vset.pattern.permute.xlu0 0
    %29 = vperm.xlu0 %28, %v26
    %v30 = vpop.permute.xlu0 %29
    %v32 = vmax.f32 %v24, %v30
    %v33 = vmax.f32 %v25, %v30
    %34 = vst [vmem:[#allocation5] sm:$0xff] %v32
    %35 = vst [vmem:[#allocation5 + $0x8] sm:$0xff] %v33
    // Predicated region
    $region14: #{tpu_custom_call.1} parent=1 // pred_check
      _
    $region15: #{tpu_custom_call.1} parent=1 // pred_check_branch
      %37 = sbr.rel (0) target = $region17
    $region16: #{tpu_custom_call.1} parent=1 // pred_region
      %s39 = ssub.s32 256, 256
      %40 = vsyncadd [#allocation4], %s39
      %s42 = sshll.u32 [#allocation5], 4
      %s43 = int_to_ptr.vmem [resolvable:$true] %s42
      %45 = dma.vmem_to_hbm [thread:$0]  %s43, 256, %s2, [#allocation4]
    $region17: #{tpu_custom_call.1} parent=1 // pred_fallthru
      _
    // Predicated region
    $region18: #{tpu_custom_call.1} parent=1 // pred_check
      _
    $region19: #{tpu_custom_call.1} parent=1 // pred_check_branch
      %47 = sbr.rel (0) target = $region21
    $region20: #{tpu_custom_call.1} parent=1 // pred_region
      %48 = dma.done [#allocation4], 256
    $region21: #{tpu_custom_call.1} parent=1 // pred_fallthru
      _
    %49 = vsyncpa [#allocation3], 1
    %50 = vsyncpa [#allocation4], 1

</llo_original>
